<compile_context>
chip_gen: v6e
topology: v6e:2x2x1
jax: 0.10.0
libtpu: 0.0.40
codegen_flags: <defaults>
</compile_context>

<pallas_src>
import functools

import jax
import jax.numpy as jnp
from jax.experimental import pallas as pl
from jax.experimental.pallas import tpu as pltpu

LANE = 128
SUBLANE = 8


def _round_up(n: int, m: int) -> int:
    return ((n + m - 1) // m) * m


def _fc_fused_kernel(*refs, out_widths):
    """refs = (x_ref, bias_ref, w1, w2, ..., wL, o_ref).

    x_ref:    (B_pad, K_pad)       f32 activations
    bias_ref: (L, N_max)           f32, row i = bias of layer i (zero-padded)
    w_i:      (K_pad_i, N_pad_i)   weights (zero-padded, lane-dense)
    o_ref:    (B_pad, N_pad_last)  f32 lane-dense output

    Computes h <- relu(h @ w_i + b_i) for hidden layers and the final Linear without
    ReLU, entirely in VMEM/vregs (no HBM traffic for intermediates).
    """
    x_ref = refs[0]
    b_ref = refs[1]
    o_ref = refs[-1]
    w_refs = refs[2:-1]
    num_layers = len(w_refs)

    h = x_ref[...]                                     # f32
    for i in range(num_layers):
        w = w_refs[i][...]
        n = out_widths[i]                              # static padded width
        b = b_ref[pl.ds(i, 1), pl.ds(0, n)]            # (1, n) f32
        y = jnp.dot(h.astype(w.dtype), w, preferred_element_type=jnp.float32) + b
        if i < num_layers - 1:
            y = jnp.maximum(y, 0.0)                    # ReLU (Dropout == identity)
        h = y
    o_ref[...] = h.astype(o_ref.dtype)                 # unmasked lane/sublane-dense store


def init_fc_params(key, input_size, hidden_sizes, num_classes, dtype=jnp.float32):
    """Deterministic parameter init (PyTorch-Linear-style uniform bounds), f32 storage.

    Weights are stored as (in_features, out_features) = transpose of PyTorch's (out, in)
    so the kernel computes y = x @ W + b directly on the MXU.
    """
    params = []
    sizes = [input_size] + list(hidden_sizes) + [num_classes]
    for i in range(len(sizes) - 1):
        fan_in, fan_out = sizes[i], sizes[i + 1]
        key, kw, kb = jax.random.split(key, 3)
        bound = 1.0 / (fan_in ** 0.5)
        w = jax.random.uniform(kw, (fan_in, fan_out), dtype, -bound, bound)
        b = jax.random.uniform(kb, (fan_out,), dtype, -bound, bound)
        params.append((w, b))
    return params


def prepare_fc_params(params, weight_dtype=jnp.float32):
    """One-time prep (hoisted out of the forward path):
       * zero-pad every layer's output width to a multiple of 128 lanes,
       * zero-pad each layer's K rows to match the previous layer's padded width,
       * pack all biases into one (num_layers, N_max) f32 array (one DMA instead of L).
    All padding is numerically exact."""
    num_layers = len(params)
    k_pad0 = _round_up(params[0][0].shape[0], LANE)

    w_list = []
    out_widths = []
    prev_pad = k_pad0
    for (w, _) in params:
        k, n = w.shape
        n_pad = _round_up(max(n, LANE), LANE)
        w_p = jnp.zeros((prev_pad, n_pad), jnp.float32).at[:k, :n].set(
            w.astype(jnp.float32))
        w_list.append(w_p.astype(weight_dtype))
        out_widths.append(n_pad)
        prev_pad = n_pad

    n_max = max(out_widths)
    bias_pack = jnp.zeros((num_layers, n_max), jnp.float32)
    for i, (_, b) in enumerate(params):
        bias_pack = bias_pack.at[i, : b.shape[0]].set(b.astype(jnp.float32))

    return w_list, bias_pack, tuple(out_widths), k_pad0


def make_fc_forward(params, num_classes, weight_dtype=jnp.float32):
    """Build a jitted forward for FCModel: flatten -> hidden Linear+ReLU layers ->
    output Linear, executed as a single fused Pallas kernel."""
    w_list, bias_pack, out_widths, k_pad0 = prepare_fc_params(params, weight_dtype)
    n_out_pad = out_widths[-1]
    kernel = functools.partial(_fc_fused_kernel, out_widths=out_widths)
    vmem_spec = pl.BlockSpec(memory_space=pltpu.MemorySpace.VMEM)
    n_inputs = 2 + len(w_list)

    @jax.jit
    def forward(x):
        batch = x.shape[0]
        h = x.reshape(batch, -1).astype(jnp.float32)         # x.view(x.size(0), -1)
        k = h.shape[1]
        b_pad = max(_round_up(batch, SUBLANE), SUBLANE)       # sublane-dense M
        h = jnp.pad(h, ((0, b_pad - batch), (0, k_pad0 - k)))  # exact zero padding

        out_padded = pl.pallas_call(
            kernel,
            out_shape=jax.ShapeDtypeStruct((b_pad, n_out_pad), jnp.float32),
            in_specs=[vmem_spec] * n_inputs,
            out_specs=vmem_spec,
        )(h, bias_pack, *w_list)

        # Slice inside the same jit (fuses; no extra dispatch / HBM round trip).
        return out_padded[:batch, :num_classes]

    return forward


if __name__ == "__main__":
    key = jax.random.PRNGKey(0)

    # Small shapes consistent with the module: NCHW image input flattened.
    B, C, H, W = 2, 4, 16, 16
    input_size = C * H * W            # 1024
    hidden_sizes = [128, 64]
    num_classes = 10

    key, kx, kp = jax.random.split(key, 3)
    x = jax.random.normal(kx, (B, C, H, W), jnp.float32)
    params = init_fc_params(kp, input_size, hidden_sizes, num_classes)

    # Parameter prep hoisted out of the forward path; forward is fully jitted.
    forward = make_fc_forward(params, num_classes)

    out = jax.block_until_ready(forward(x))
    assert out.shape == (B, num_classes)
    assert out.dtype == jnp.float32

    # Plain-JAX f32 reference. Tolerance covers the difference between the kernel's
    # MXU matmul path and XLA's default-precision f32 matmul on TPU.
    h_ref = x.reshape(B, -1)
    for (w, b) in params[:-1]:
        h_ref = jnp.maximum(h_ref @ w + b, 0.0)
    ref = h_ref @ params[-1][0] + params[-1][1]
    max_err = jnp.max(jnp.abs(out - ref))
    assert jnp.allclose(out, ref, atol=5e-2, rtol=5e-2), float(max_err)

    print("KERNEL_OK")
</pallas_src>

<mosaic_0001>
module attributes {stable_mosaic.version = 11 : i64} {
  func.func @_fc_fused_kernel(%arg0: memref<8x1024xf32, #tpu.memory_space<vmem>>, %arg1: memref<3x128xf32, #tpu.memory_space<vmem>>, %arg2: memref<1024x128xf32, #tpu.memory_space<vmem>>, %arg3: memref<128x128xf32, #tpu.memory_space<vmem>>, %arg4: memref<128x128xf32, #tpu.memory_space<vmem>>, %arg5: memref<8x128xf32, #tpu.memory_space<vmem>>) attributes {dimension_semantics = [], scalar_prefetch = 0 : i64, scratch_operands = 0 : i64, tpu.core_type = #tpu.core_type<tc>} {
    %c0 = arith.constant 0 : index
    %c0_0 = arith.constant 0 : index
    %0 = vector.load %arg0[%c0, %c0_0] : memref<8x1024xf32, #tpu.memory_space<vmem>>, vector<8x1024xf32>
    %c0_1 = arith.constant 0 : index
    %c0_2 = arith.constant 0 : index
    %1 = vector.load %arg2[%c0_1, %c0_2] : memref<1024x128xf32, #tpu.memory_space<vmem>>, vector<1024x128xf32>
    %c0_3 = arith.constant 0 : index
    %c0_4 = arith.constant 0 : index
    %2 = vector.load %arg1[%c0_3, %c0_4] : memref<3x128xf32, #tpu.memory_space<vmem>>, vector<1x128xf32>
    %cst = arith.constant dense<0.000000e+00> : vector<8x128xf32>
    %3 = tpu.matmul %0, %1, %cst {dimension_numbers = #tpu.dot_dimension_numbers<[1], [0], [0], [1], [0, 0, 1, 1], [], []>} : vector<8x1024xf32>, vector<1024x128xf32>, vector<8x128xf32> -> vector<8x128xf32>
    %4 = vector.broadcast %2 : vector<1x128xf32> to vector<8x128xf32>
    %5 = arith.addf %3, %4 : vector<8x128xf32>
    %cst_5 = arith.constant 0.000000e+00 : f32
    %6 = vector.broadcast %cst_5 : f32 to vector<8x128xf32>
    %7 = arith.maximumf %5, %6 : vector<8x128xf32>
    %c0_6 = arith.constant 0 : index
    %c0_7 = arith.constant 0 : index
    %8 = vector.load %arg3[%c0_6, %c0_7] : memref<128x128xf32, #tpu.memory_space<vmem>>, vector<128x128xf32>
    %c1 = arith.constant 1 : index
    %c0_8 = arith.constant 0 : index
    %9 = vector.load %arg1[%c1, %c0_8] : memref<3x128xf32, #tpu.memory_space<vmem>>, vector<1x128xf32>
    %cst_9 = arith.constant dense<0.000000e+00> : vector<8x128xf32>
    %10 = tpu.matmul %7, %8, %cst_9 {dimension_numbers = #tpu.dot_dimension_numbers<[1], [0], [0], [1], [0, 0, 1, 1], [], []>} : vector<8x128xf32>, vector<128x128xf32>, vector<8x128xf32> -> vector<8x128xf32>
    %11 = vector.broadcast %9 : vector<1x128xf32> to vector<8x128xf32>
    %12 = arith.addf %10, %11 : vector<8x128xf32>
    %cst_10 = arith.constant 0.000000e+00 : f32
    %13 = vector.broadcast %cst_10 : f32 to vector<8x128xf32>
    %14 = arith.maximumf %12, %13 : vector<8x128xf32>
    %c0_11 = arith.constant 0 : index
    %c0_12 = arith.constant 0 : index
    %15 = vector.load %arg4[%c0_11, %c0_12] : memref<128x128xf32, #tpu.memory_space<vmem>>, vector<128x128xf32>
    %c2 = arith.constant 2 : index
    %c0_13 = arith.constant 0 : index
    %16 = vector.load %arg1[%c2, %c0_13] : memref<3x128xf32, #tpu.memory_space<vmem>>, vector<1x128xf32>
    %cst_14 = arith.constant dense<0.000000e+00> : vector<8x128xf32>
    %17 = tpu.matmul %14, %15, %cst_14 {dimension_numbers = #tpu.dot_dimension_numbers<[1], [0], [0], [1], [0, 0, 1, 1], [], []>} : vector<8x128xf32>, vector<128x128xf32>, vector<8x128xf32> -> vector<8x128xf32>
    %18 = vector.broadcast %16 : vector<1x128xf32> to vector<8x128xf32>
    %19 = arith.addf %17, %18 : vector<8x128xf32>
    %c0_15 = arith.constant 0 : index
    %c0_16 = arith.constant 0 : index
    %20 = vector.load %arg5[%c0_15, %c0_16] : memref<8x128xf32, #tpu.memory_space<vmem>>, vector<8x128xf32>
    tpu.vector_store %arg5[%c0_15, %c0_16], %19 {strides = array<i32>} : memref<8x128xf32, #tpu.memory_space<vmem>>, vector<8x128xf32>,
    return
  }
}

</mosaic_0001>

<llo_original>
// kernel: forward.1
$region0: #{forward.1}
  #allocation0 [shape = 'u32[]', space=smem, size = 0x4, offset = 0x4, fixed_abs, tag = 'smem constant byte address 0x4 - core index']
  #allocation1 [shape = 'u32[144,128]{1,0:T(1,128)}', space=vmem, size = 0x12000, scoped, tag = 'internal scratch']
  %s0 = inlined_call_operand.vmem [shape: f32[8,1024], index: 0, kind: input, shape index: {}]
  %s1 = inlined_call_operand.vmem [shape: f32[3,128], index: 1, kind: input, shape index: {}]
  %s2 = inlined_call_operand.hbm [shape: f32[1024,128], index: 2, kind: input, shape index: {}]
  %s3 = inlined_call_operand.hbm [shape: f32[128,128], index: 3, kind: input, shape index: {}]
  %s4 = inlined_call_operand.vmem [shape: f32[128,128], index: 4, kind: input, shape index: {}]
  %s5 = inlined_call_operand.vmem [shape: f32[8,128], index: 5, kind: output, shape index: {}]
  %s6 = sld [smem:[#allocation0]]
  $region38: #{forward.1} parent=0
    _
  %s8 = ssub.s32 1, %s6
  %s9 = scalar_select 0, %s8, %s6
  $region1: #{forward.1} parent=0
    #allocation2 [shape = 'u8[524288]{0}', space=vmem, size = 0x80000, scoped, tag = 'input window, operand 2, single buffered']
    #allocation3 [shape = 's32[1]{0}', space=sflag, size = 0x4, scoped, tag = 'scoped memory for forward.1']
    #allocation4 [shape = 'u8[65536]{0}', space=vmem, size = 0x10000, scoped, tag = 'input window, operand 3, single buffered']
    #allocation5 [shape = 's32[1]{0}', space=sflag, size = 0x4, scoped, tag = 'scoped memory for forward.1']
    %10 = vsyncpa [#allocation3], 0
    %11 = vsyncpa [#allocation5], 0
    // Predicated region
    $region2: #{forward.1} parent=1 // pred_check
      _
    $region3: #{forward.1} parent=1 // pred_check_branch
      %13 = sbr.rel (0) target = $region5
    $region4: #{forward.1} parent=1 // pred_region
      _
    $region5: #{forward.1} parent=1 // pred_fallthru
      _
    // Predicated region
    $region6: #{forward.1} parent=1 // pred_check
      _
    $region7: #{forward.1} parent=1 // pred_check_branch
      %15 = sbr.rel (0) target = $region9
    $region8: #{forward.1} parent=1 // pred_region
      _
    $region9: #{forward.1} parent=1 // pred_fallthru
      _
    // Predicated region
    $region10: #{forward.1} parent=1 // pred_check
      _
    $region11: #{forward.1} parent=1 // pred_check_branch
      %17 = sbr.rel (0) target = $region13
    $region12: #{forward.1} parent=1 // pred_region
      %s19 = ssub.s32 16384, 16384
      %20 = vsyncadd [#allocation3], %s19
      %s21 = sshll.u32 [#allocation2], 4
      %s22 = int_to_ptr.vmem [resolvable:$true] %s21
      %27 = dma.hbm_to_vmem [thread:$0]  %s2, 16384, %s22, [#allocation3], 128, 128, 8
    $region13: #{forward.1} parent=1 // pred_fallthru
      _
    // Predicated region
    $region14: #{forward.1} parent=1 // pred_check
      _
    $region15: #{forward.1} parent=1 // pred_check_branch
      %29 = sbr.rel (0) target = $region17
    $region16: #{forward.1} parent=1 // pred_region
      %s31 = ssub.s32 2048, 2048
      %32 = vsyncadd [#allocation5], %s31
      %s33 = sshll.u32 [#allocation4], 4
      %s34 = int_to_ptr.vmem [resolvable:$true] %s33
      %39 = dma.hbm_to_vmem [thread:$0]  %s3, 2048, %s34, [#allocation5], 128, 128, 8
    $region17: #{forward.1} parent=1 // pred_fallthru
      _
    // Predicated region
    $region18: #{forward.1} parent=1 // pred_check
      _
    $region19: #{forward.1} parent=1 // pred_check_branch
      %41 = sbr.rel (0) target = $region21
    $region20: #{forward.1} parent=1 // pred_region
      _
    $region21: #{forward.1} parent=1 // pred_fallthru
      _
    // Predicated region
    $region22: #{forward.1} parent=1 // pred_check
      _
    $region23: #{forward.1} parent=1 // pred_check_branch
      %43 = sbr.rel (0) target = $region25
    $region24: #{forward.1} parent=1 // pred_region
      %44 = dma.done [#allocation3], 16384
    $region25: #{forward.1} parent=1 // pred_fallthru
      _
    // Predicated region
    $region26: #{forward.1} parent=1 // pred_check
      _
    $region27: #{forward.1} parent=1 // pred_check_branch
      %46 = sbr.rel (0) target = $region29
    $region28: #{forward.1} parent=1 // pred_region
      %47 = dma.done [#allocation5], 2048
    $region29: #{forward.1} parent=1 // pred_fallthru
      _
    %v48 = vld [vmem:[%s0] sm:$0xff]
    %v49 = vld [vmem:[%s0 + $0x8] sm:$0xff]
    %v50 = vld [vmem:[%s0 + $0x10] sm:$0xff]
    %v51 = vld [vmem:[%s0 + $0x18] sm:$0xff]
    %v52 = vld [vmem:[%s0 + $0x20] sm:$0xff]
    %v53 = vld [vmem:[%s0 + $0x28] sm:$0xff]
    %v54 = vld [vmem:[%s0 + $0x30] sm:$0xff]
    %v55 = vld [vmem:[%s0 + $0x38] sm:$0xff]
    %v56 = vld [vmem:[#allocation2] sm:$0xff]
    %v57 = vld [vmem:[#allocation2 + $0x8] sm:$0xff]
    %v58 = vld [vmem:[#allocation2 + $0x10] sm:$0xff]
    %v59 = vld [vmem:[#allocation2 + $0x18] sm:$0xff]
    %v60 = vld [vmem:[#allocation2 + $0x20] sm:$0xff]
    %v61 = vld [vmem:[#allocation2 + $0x28] sm:$0xff]
    %v62 = vld [vmem:[#allocation2 + $0x30] sm:$0xff]
    %v63 = vld [vmem:[#allocation2 + $0x38] sm:$0xff]
    %v64 = vld [vmem:[#allocation2 + $0x40] sm:$0xff]
    %v65 = vld [vmem:[#allocation2 + $0x48] sm:$0xff]
    %v66 = vld [vmem:[#allocation2 + $0x50] sm:$0xff]
    %v67 = vld [vmem:[#allocation2 + $0x58] sm:$0xff]
    %v68 = vld [vmem:[#allocation2 + $0x60] sm:$0xff]
    %v69 = vld [vmem:[#allocation2 + $0x68] sm:$0xff]
    %v70 = vld [vmem:[#allocation2 + $0x70] sm:$0xff]
    %v71 = vld [vmem:[#allocation2 + $0x78] sm:$0xff]
    %v72 = vld [vmem:[#allocation2 + $0x80] sm:$0xff]
    %v73 = vld [vmem:[#allocation2 + $0x88] sm:$0xff]
    %v74 = vld [vmem:[#allocation2 + $0x90] sm:$0xff]
    %v75 = vld [vmem:[#allocation2 + $0x98] sm:$0xff]
    %v76 = vld [vmem:[#allocation2 + $0xa0] sm:$0xff]
    %v77 = vld [vmem:[#allocation2 + $0xa8] sm:$0xff]
    %v78 = vld [vmem:[#allocation2 + $0xb0] sm:$0xff]
    %v79 = vld [vmem:[#allocation2 + $0xb8] sm:$0xff]
    %v80 = vld [vmem:[#allocation2 + $0xc0] sm:$0xff]
    %v81 = vld [vmem:[#allocation2 + $0xc8] sm:$0xff]
    %v82 = vld [vmem:[#allocation2 + $0xd0] sm:$0xff]
    %v83 = vld [vmem:[#allocation2 + $0xd8] sm:$0xff]
    %v84 = vld [vmem:[#allocation2 + $0xe0] sm:$0xff]
    %v85 = vld [vmem:[#allocation2 + $0xe8] sm:$0xff]
    %v86 = vld [vmem:[#allocation2 + $0xf0] sm:$0xff]
    %v87 = vld [vmem:[#allocation2 + $0xf8] sm:$0xff]
    %v88 = vld [vmem:[#allocation2 + $0x100] sm:$0xff]
    %v89 = vld [vmem:[#allocation2 + $0x108] sm:$0xff]
    %v90 = vld [vmem:[#allocation2 + $0x110] sm:$0xff]
    %v91 = vld [vmem:[#allocation2 + $0x118] sm:$0xff]
    %v92 = vld [vmem:[#allocation2 + $0x120] sm:$0xff]
    %v93 = vld [vmem:[#allocation2 + $0x128] sm:$0xff]
    %v94 = vld [vmem:[#allocation2 + $0x130] sm:$0xff]
    %v95 = vld [vmem:[#allocation2 + $0x138] sm:$0xff]
    %v96 = vld [vmem:[#allocation2 + $0x140] sm:$0xff]
    %v97 = vld [vmem:[#allocation2 + $0x148] sm:$0xff]
    %v98 = vld [vmem:[#allocation2 + $0x150] sm:$0xff]
    %v99 = vld [vmem:[#allocation2 + $0x158] sm:$0xff]
    %v100 = vld [vmem:[#allocation2 + $0x160] sm:$0xff]
    %v101 = vld [vmem:[#allocation2 + $0x168] sm:$0xff]
    %v102 = vld [vmem:[#allocation2 + $0x170] sm:$0xff]
    %v103 = vld [vmem:[#allocation2 + $0x178] sm:$0xff]
    %v104 = vld [vmem:[#allocation2 + $0x180] sm:$0xff]
    %v105 = vld [vmem:[#allocation2 + $0x188] sm:$0xff]
    %v106 = vld [vmem:[#allocation2 + $0x190] sm:$0xff]
    %v107 = vld [vmem:[#allocation2 + $0x198] sm:$0xff]
    %v108 = vld [vmem:[#allocation2 + $0x1a0] sm:$0xff]
    %v109 = vld [vmem:[#allocation2 + $0x1a8] sm:$0xff]
    %v110 = vld [vmem:[#allocation2 + $0x1b0] sm:$0xff]
    %v111 = vld [vmem:[#allocation2 + $0x1b8] sm:$0xff]
    %v112 = vld [vmem:[#allocation2 + $0x1c0] sm:$0xff]
    %v113 = vld [vmem:[#allocation2 + $0x1c8] sm:$0xff]
    %v114 = vld [vmem:[#allocation2 + $0x1d0] sm:$0xff]
    %v115 = vld [vmem:[#allocation2 + $0x1d8] sm:$0xff]
    %v116 = vld [vmem:[#allocation2 + $0x1e0] sm:$0xff]
    %v117 = vld [vmem:[#allocation2 + $0x1e8] sm:$0xff]
    %v118 = vld [vmem:[#allocation2 + $0x1f0] sm:$0xff]
    %v119 = vld [vmem:[#allocation2 + $0x1f8] sm:$0xff]
    %v120 = vld [vmem:[#allocation2 + $0x200] sm:$0xff]
    %v121 = vld [vmem:[#allocation2 + $0x208] sm:$0xff]
    %v122 = vld [vmem:[#allocation2 + $0x210] sm:$0xff]
    %v123 = vld [vmem:[#allocation2 + $0x218] sm:$0xff]
    %v124 = vld [vmem:[#allocation2 + $0x220] sm:$0xff]
    %v125 = vld [vmem:[#allocation2 + $0x228] sm:$0xff]
    %v126 = vld [vmem:[#allocation2 + $0x230] sm:$0xff]
    %v127 = vld [vmem:[#allocation2 + $0x238] sm:$0xff]
    %v128 = vld [vmem:[#allocation2 + $0x240] sm:$0xff]
    %v129 = vld [vmem:[#allocation2 + $0x248] sm:$0xff]
    %v130 = vld [vmem:[#allocation2 + $0x250] sm:$0xff]
    %v131 = vld [vmem:[#allocation2 + $0x258] sm:$0xff]
    %v132 = vld [vmem:[#allocation2 + $0x260] sm:$0xff]
    %v133 = vld [vmem:[#allocation2 + $0x268] sm:$0xff]
    %v134 = vld [vmem:[#allocation2 + $0x270] sm:$0xff]
    %v135 = vld [vmem:[#allocation2 + $0x278] sm:$0xff]
    %v136 = vld [vmem:[#allocation2 + $0x280] sm:$0xff]
    %v137 = vld [vmem:[#allocation2 + $0x288] sm:$0xff]
    %v138 = vld [vmem:[#allocation2 + $0x290] sm:$0xff]
    %v139 = vld [vmem:[#allocation2 + $0x298] sm:$0xff]
    %v140 = vld [vmem:[#allocation2 + $0x2a0] sm:$0xff]
    %v141 = vld [vmem:[#allocation2 + $0x2a8] sm:$0xff]
    %v142 = vld [vmem:[#allocation2 + $0x2b0] sm:$0xff]
    %v143 = vld [vmem:[#allocation2 + $0x2b8] sm:$0xff]
    %v144 = vld [vmem:[#allocation2 + $0x2c0] sm:$0xff]
    %v145 = vld [vmem:[#allocation2 + $0x2c8] sm:$0xff]
    %v146 = vld [vmem:[#allocation2 + $0x2d0] sm:$0xff]
    %v147 = vld [vmem:[#allocation2 + $0x2d8] sm:$0xff]
    %v148 = vld [vmem:[#allocation2 + $0x2e0] sm:$0xff]
    %v149 = vld [vmem:[#allocation2 + $0x2e8] sm:$0xff]
    %v150 = vld [vmem:[#allocation2 + $0x2f0] sm:$0xff]
    %v151 = vld [vmem:[#allocation2 + $0x2f8] sm:$0xff]
    %v152 = vld [vmem:[#allocation2 + $0x300] sm:$0xff]
    %v153 = vld [vmem:[#allocation2 + $0x308] sm:$0xff]
    %v154 = vld [vmem:[#allocation2 + $0x310] sm:$0xff]
    %v155 = vld [vmem:[#allocation2 + $0x318] sm:$0xff]
    %v156 = vld [vmem:[#allocation2 + $0x320] sm:$0xff]
    %v157 = vld [vmem:[#allocation2 + $0x328] sm:$0xff]
    %v158 = vld [vmem:[#allocation2 + $0x330] sm:$0xff]
    %v159 = vld [vmem:[#allocation2 + $0x338] sm:$0xff]
    %v160 = vld [vmem:[#allocation2 + $0x340] sm:$0xff]
    %v161 = vld [vmem:[#allocation2 + $0x348] sm:$0xff]
    %v162 = vld [vmem:[#allocation2 + $0x350] sm:$0xff]
    %v163 = vld [vmem:[#allocation2 + $0x358] sm:$0xff]
    %v164 = vld [vmem:[#allocation2 + $0x360] sm:$0xff]
    %v165 = vld [vmem:[#allocation2 + $0x368] sm:$0xff]
    %v166 = vld [vmem:[#allocation2 + $0x370] sm:$0xff]
    %v167 = vld [vmem:[#allocation2 + $0x378] sm:$0xff]
    %v168 = vld [vmem:[#allocation2 + $0x380] sm:$0xff]
    %v169 = vld [vmem:[#allocation2 + $0x388] sm:$0xff]
    %v170 = vld [vmem:[#allocation2 + $0x390] sm:$0xff]
    %v171 = vld [vmem:[#allocation2 + $0x398] sm:$0xff]
    %v172 = vld [vmem:[#allocation2 + $0x3a0] sm:$0xff]
    %v173 = vld [vmem:[#allocation2 + $0x3a8] sm:$0xff]
    %v174 = vld [vmem:[#allocation2 + $0x3b0] sm:$0xff]
    %v175 = vld [vmem:[#allocation2 + $0x3b8] sm:$0xff]
    %v176 = vld [vmem:[#allocation2 + $0x3c0] sm:$0xff]
    %v177 = vld [vmem:[#allocation2 + $0x3c8] sm:$0xff]
    %v178 = vld [vmem:[#allocation2 + $0x3d0] sm:$0xff]
    %v179 = vld [vmem:[#allocation2 + $0x3d8] sm:$0xff]
    %v180 = vld [vmem:[#allocation2 + $0x3e0] sm:$0xff]
    %v181 = vld [vmem:[#allocation2 + $0x3e8] sm:$0xff]
    %v182 = vld [vmem:[#allocation2 + $0x3f0] sm:$0xff]
    %v183 = vld [vmem:[#allocation2 + $0x3f8] sm:$0xff]
    %v184 = vld [vmem:[%s1] sm:$0x1]
    %v185 = vlaneseq
    %v186 = vshrl.u32 %v185, 7
    %v187 = vsub.s32 0, %v186
    %v188 = vrot.slane %v184, %v187
    %189 = vmatprep.subr.mxu0 0.0
    %190 = vmatpush1.msra.mxu0 %v71
    %191 = vmatprep.subr.mxu0 0.0
    %192 = vmatpush1.msra.mxu0 %v70
    %193 = vmatprep.subr.mxu0 0.0
    %194 = vmatpush1.msra.mxu0 %v69
    %195 = vmatprep.subr.mxu0 0.0
    %196 = vmatpush1.msra.mxu0 %v68
    %197 = vmatprep.subr.mxu0 0.0
    %198 = vmatpush1.msra.mxu0 %v67
    %199 = vmatprep.subr.mxu0 0.0
    %200 = vmatpush1.msra.mxu0 %v66
    %201 = vmatprep.subr.mxu0 0.0
    %202 = vmatpush1.msra.mxu0 %v65
    %203 = vmatprep.subr.mxu0 0.0
    %204 = vmatpush1.msra.mxu0 %v64
    %205 = vmatprep.subr.mxu0 0.0
    %206 = vmatpush1.msra.mxu0 %v63
    %207 = vmatprep.subr.mxu0 0.0
    %208 = vmatpush1.msra.mxu0 %v62
    %209 = vmatprep.subr.mxu0 0.0
    %210 = vmatpush1.msra.mxu0 %v61
    %211 = vmatprep.subr.mxu0 0.0
    %212 = vmatpush1.msra.mxu0 %v60
    %213 = vmatprep.subr.mxu0 0.0
    %214 = vmatpush1.msra.mxu0 %v59
    %215 = vmatprep.subr.mxu0 0.0
    %216 = vmatpush1.msra.mxu0 %v58
    %217 = vmatprep.subr.mxu0 0.0
    %218 = vmatpush1.msra.mxu0 %v57
    %219 = vmatprep.subr.mxu0 0.0
    %220 = vmatpush1.msra.mxu0 %v56
    %221 = vmatprep.subr.mxu0 0.0
    %222 = vmatpush2.msra.mxu0 %v87
    %223 = vmatprep.subr.mxu0 0.0
    %224 = vmatpush2.msra.mxu0 %v86
    %225 = vmatprep.subr.mxu0 0.0
    %226 = vmatpush2.msra.mxu0 %v85
    %227 = vmatprep.subr.mxu0 0.0
    %228 = vmatpush2.msra.mxu0 %v84
    %229 = vmatprep.subr.mxu0 0.0
    %230 = vmatpush2.msra.mxu0 %v83
    %231 = vmatprep.subr.mxu0 0.0
    %232 = vmatpush2.msra.mxu0 %v82
    %233 = vmatprep.subr.mxu0 0.0
    %234 = vmatpush2.msra.mxu0 %v81
    %235 = vmatprep.subr.mxu0 0.0
    %236 = vmatpush2.msra.mxu0 %v80
    %237 = vmatprep.subr.mxu0 0.0
    %238 = vmatpush2.msra.mxu0 %v79
    %239 = vmatprep.subr.mxu0 0.0
    %240 = vmatpush2.msra.mxu0 %v78
    %241 = vmatprep.subr.mxu0 0.0
    %242 = vmatpush2.msra.mxu0 %v77
    %243 = vmatprep.subr.mxu0 0.0
    %244 = vmatpush2.msra.mxu0 %v76
    %245 = vmatprep.subr.mxu0 0.0
    %246 = vmatpush2.msra.mxu0 %v75
    %247 = vmatprep.subr.mxu0 0.0
    %248 = vmatpush2.msra.mxu0 %v74
    %249 = vmatprep.subr.mxu0 0.0
    %250 = vmatpush2.msra.mxu0 %v73
    %251 = vmatprep.subr.mxu0 0.0
    %252 = vmatpush2.msra.mxu0 %v72
    %253 = vmatprep.mubr.f32.mxu0 %v49
    %254 = vmatmul.mubr.f32.gmra.mxu0 %v48
    %v255 = vpop.f32.mrf.mxu0
    %v256 = vadd.f32 %v188, %v255
    %v257 = vpop.f32.mrf.mxu0
    %258 = vdwg.mxu0
    %259 = vmatprep.subr.mxu0 0.0
    %260 = vmatpush1.msra.mxu0 %v103
    %261 = vmatprep.subr.mxu0 0.0
    %262 = vmatpush1.msra.mxu0 %v102
    %263 = vmatprep.subr.mxu0 0.0
    %264 = vmatpush1.msra.mxu0 %v101
    %265 = vmatprep.subr.mxu0 0.0
    %266 = vmatpush1.msra.mxu0 %v100
    %267 = vmatprep.subr.mxu0 0.0
    %268 = vmatpush1.msra.mxu0 %v99
    %269 = vmatprep.subr.mxu0 0.0
    %270 = vmatpush1.msra.mxu0 %v98
    %271 = vmatprep.subr.mxu0 0.0
    %272 = vmatpush1.msra.mxu0 %v97
    %273 = vmatprep.subr.mxu0 0.0
    %274 = vmatpush1.msra.mxu0 %v96
    %275 = vmatprep.subr.mxu0 0.0
    %276 = vmatpush1.msra.mxu0 %v95
    %277 = vmatprep.subr.mxu0 0.0
    %278 = vmatpush1.msra.mxu0 %v94
    %279 = vmatprep.subr.mxu0 0.0
    %280 = vmatpush1.msra.mxu0 %v93
    %281 = vmatprep.subr.mxu0 0.0
    %282 = vmatpush1.msra.mxu0 %v92
    %283 = vmatprep.subr.mxu0 0.0
    %284 = vmatpush1.msra.mxu0 %v91
    %285 = vmatprep.subr.mxu0 0.0
    %286 = vmatpush1.msra.mxu0 %v90
    %287 = vmatprep.subr.mxu0 0.0
    %288 = vmatpush1.msra.mxu0 %v89
    %289 = vmatprep.subr.mxu0 0.0
    %290 = vmatpush1.msra.mxu0 %v88
    %291 = vmatprep.subr.mxu0 0.0
    %292 = vmatpush2.msra.mxu0 %v119
    %293 = vmatprep.subr.mxu0 0.0
    %294 = vmatpush2.msra.mxu0 %v118
    %295 = vmatprep.subr.mxu0 0.0
    %296 = vmatpush2.msra.mxu0 %v117
    %297 = vmatprep.subr.mxu0 0.0
    %298 = vmatpush2.msra.mxu0 %v116
    %299 = vmatprep.subr.mxu0 0.0
    %300 = vmatpush2.msra.mxu0 %v115
    %301 = vmatprep.subr.mxu0 0.0
    %302 = vmatpush2.msra.mxu0 %v114
    %303 = vmatprep.subr.mxu0 0.0
    %304 = vmatpush2.msra.mxu0 %v113
    %305 = vmatprep.subr.mxu0 0.0
    %306 = vmatpush2.msra.mxu0 %v112
    %307 = vmatprep.subr.mxu0 0.0
    %308 = vmatpush2.msra.mxu0 %v111
    %309 = vmatprep.subr.mxu0 0.0
    %310 = vmatpush2.msra.mxu0 %v110
    %311 = vmatprep.subr.mxu0 0.0
    %312 = vmatpush2.msra.mxu0 %v109
    %313 = vmatprep.subr.mxu0 0.0
    %314 = vmatpush2.msra.mxu0 %v108
    %315 = vmatprep.subr.mxu0 0.0
    %316 = vmatpush2.msra.mxu0 %v107
    %317 = vmatprep.subr.mxu0 0.0
    %318 = vmatpush2.msra.mxu0 %v106
    %319 = vmatprep.subr.mxu0 0.0
    %320 = vmatpush2.msra.mxu0 %v105
    %321 = vmatprep.subr.mxu0 0.0
    %322 = vmatpush2.msra.mxu0 %v104
    %323 = vmatprep.mubr.f32.mxu0 %v51
    %324 = vmatmul.mubr.f32.gmra.mxu0 %v50
    %v325 = vpop.f32.mrf.mxu0
    %v326 = vadd.f32 %v256, %v325
    %v327 = vpop.f32.mrf.mxu0
    %328 = vdwg.mxu0
    %329 = vmatprep.subr.mxu0 0.0
    %330 = vmatpush1.msra.mxu0 %v135
    %331 = vmatprep.subr.mxu0 0.0
    %332 = vmatpush1.msra.mxu0 %v134
    %333 = vmatprep.subr.mxu0 0.0
    %334 = vmatpush1.msra.mxu0 %v133
    %335 = vmatprep.subr.mxu0 0.0
    %336 = vmatpush1.msra.mxu0 %v132
    %337 = vmatprep.subr.mxu0 0.0
    %338 = vmatpush1.msra.mxu0 %v131
    %339 = vmatprep.subr.mxu0 0.0
    %340 = vmatpush1.msra.mxu0 %v130
    %341 = vmatprep.subr.mxu0 0.0
    %342 = vmatpush1.msra.mxu0 %v129
    %343 = vmatprep.subr.mxu0 0.0
    %344 = vmatpush1.msra.mxu0 %v128
    %345 = vmatprep.subr.mxu0 0.0
    %346 = vmatpush1.msra.mxu0 %v127
    %347 = vmatprep.subr.mxu0 0.0
    %348 = vmatpush1.msra.mxu0 %v126
    %349 = vmatprep.subr.mxu0 0.0
    %350 = vmatpush1.msra.mxu0 %v125
    %351 = vmatprep.subr.mxu0 0.0
    %352 = vmatpush1.msra.mxu0 %v124
    %353 = vmatprep.subr.mxu0 0.0
    %354 = vmatpush1.msra.mxu0 %v123
    %355 = vmatprep.subr.mxu0 0.0
    %356 = vmatpush1.msra.mxu0 %v122
    %357 = vmatprep.subr.mxu0 0.0
    %358 = vmatpush1.msra.mxu0 %v121
    %359 = vmatprep.subr.mxu0 0.0
    %360 = vmatpush1.msra.mxu0 %v120
    %361 = vmatprep.subr.mxu0 0.0
    %362 = vmatpush2.msra.mxu0 %v151
    %363 = vmatprep.subr.mxu0 0.0
    %364 = vmatpush2.msra.mxu0 %v150
    %365 = vmatprep.subr.mxu0 0.0
    %366 = vmatpush2.msra.mxu0 %v149
    %367 = vmatprep.subr.mxu0 0.0
    %368 = vmatpush2.msra.mxu0 %v148
    %369 = vmatprep.subr.mxu0 0.0
    %370 = vmatpush2.msra.mxu0 %v147
    %371 = vmatprep.subr.mxu0 0.0
    %372 = vmatpush2.msra.mxu0 %v146
    %373 = vmatprep.subr.mxu0 0.0
    %374 = vmatpush2.msra.mxu0 %v145
    %375 = vmatprep.subr.mxu0 0.0
    %376 = vmatpush2.msra.mxu0 %v144
    %377 = vmatprep.subr.mxu0 0.0
    %378 = vmatpush2.msra.mxu0 %v143
    %379 = vmatprep.subr.mxu0 0.0
    %380 = vmatpush2.msra.mxu0 %v142
    %381 = vmatprep.subr.mxu0 0.0
    %382 = vmatpush2.msra.mxu0 %v141
    %383 = vmatprep.subr.mxu0 0.0
    %384 = vmatpush2.msra.mxu0 %v140
    %385 = vmatprep.subr.mxu0 0.0
    %386 = vmatpush2.msra.mxu0 %v139
    %387 = vmatprep.subr.mxu0 0.0
    %388 = vmatpush2.msra.mxu0 %v138
    %389 = vmatprep.subr.mxu0 0.0
    %390 = vmatpush2.msra.mxu0 %v137
    %391 = vmatprep.subr.mxu0 0.0
    %392 = vmatpush2.msra.mxu0 %v136
    %393 = vmatprep.mubr.f32.mxu0 %v53
    %394 = vmatmul.mubr.f32.gmra.mxu0 %v52
    %v395 = vpop.f32.mrf.mxu0
    %v396 = vadd.f32 %v326, %v395
    %v397 = vpop.f32.mrf.mxu0
    %398 = vdwg.mxu0
    %399 = vmatprep.subr.mxu0 0.0
    %400 = vmatpush1.msra.mxu0 %v167
    %401 = vmatprep.subr.mxu0 0.0
    %402 = vmatpush1.msra.mxu0 %v166
    %403 = vmatprep.subr.mxu0 0.0
    %404 = vmatpush1.msra.mxu0 %v165
    %405 = vmatprep.subr.mxu0 0.0
    %406 = vmatpush1.msra.mxu0 %v164
    %407 = vmatprep.subr.mxu0 0.0
    %408 = vmatpush1.msra.mxu0 %v163
    %409 = vmatprep.subr.mxu0 0.0
    %410 = vmatpush1.msra.mxu0 %v162
    %411 = vmatprep.subr.mxu0 0.0
    %412 = vmatpush1.msra.mxu0 %v161
    %413 = vmatprep.subr.mxu0 0.0
    %414 = vmatpush1.msra.mxu0 %v160
    %415 = vmatprep.subr.mxu0 0.0
    %416 = vmatpush1.msra.mxu0 %v159
    %417 = vmatprep.subr.mxu0 0.0
    %418 = vmatpush1.msra.mxu0 %v158
    %419 = vmatprep.subr.mxu0 0.0
    %420 = vmatpush1.msra.mxu0 %v157
    %421 = vmatprep.subr.mxu0 0.0
    %422 = vmatpush1.msra.mxu0 %v156
    %423 = vmatprep.subr.mxu0 0.0
    %424 = vmatpush1.msra.mxu0 %v155
    %425 = vmatprep.subr.mxu0 0.0
    %426 = vmatpush1.msra.mxu0 %v154
    %427 = vmatprep.subr.mxu0 0.0
    %428 = vmatpush1.msra.mxu0 %v153
    %429 = vmatprep.subr.mxu0 0.0
    %430 = vmatpush1.msra.mxu0 %v152
    %431 = vmatprep.subr.mxu0 0.0
    %432 = vmatpush2.msra.mxu0 %v183
    %433 = vmatprep.subr.mxu0 0.0
    %434 = vmatpush2.msra.mxu0 %v182
    %435 = vmatprep.subr.mxu0 0.0
    %436 = vmatpush2.msra.mxu0 %v181
    %437 = vmatprep.subr.mxu0 0.0
    %438 = vmatpush2.msra.mxu0 %v180
    %439 = vmatprep.subr.mxu0 0.0
    %440 = vmatpush2.msra.mxu0 %v179
    %441 = vmatprep.subr.mxu0 0.0
    %442 = vmatpush2.msra.mxu0 %v178
    %443 = vmatprep.subr.mxu0 0.0
    %444 = vmatpush2.msra.mxu0 %v177
    %445 = vmatprep.subr.mxu0 0.0
    %446 = vmatpush2.msra.mxu0 %v176
    %447 = vmatprep.subr.mxu0 0.0
    %448 = vmatpush2.msra.mxu0 %v175
    %449 = vmatprep.subr.mxu0 0.0
    %450 = vmatpush2.msra.mxu0 %v174
    %451 = vmatprep.subr.mxu0 0.0
    %452 = vmatpush2.msra.mxu0 %v173
    %453 = vmatprep.subr.mxu0 0.0
    %454 = vmatpush2.msra.mxu0 %v172
    %455 = vmatprep.subr.mxu0 0.0
    %456 = vmatpush2.msra.mxu0 %v171
    %457 = vmatprep.subr.mxu0 0.0
    %458 = vmatpush2.msra.mxu0 %v170
    %459 = vmatprep.subr.mxu0 0.0
    %460 = vmatpush2.msra.mxu0 %v169
    %461 = vmatprep.subr.mxu0 0.0
    %462 = vmatpush2.msra.mxu0 %v168
    %463 = vmatprep.mubr.f32.mxu0 %v55
    %464 = vmatmul.mubr.f32.gmra.mxu0 %v54
    %v465 = vpop.f32.mrf.mxu0
    %v466 = vadd.f32 %v396, %v465
    %v467 = vpop.f32.mrf.mxu0
    %468 = vdwg.mxu0
    %v469 = vmax.f32 %v466, 0.0
    %v470 = vld [vmem:[#allocation4] sm:$0xff]
    %v471 = vld [vmem:[#allocation4 + $0x8] sm:$0xff]
    %v472 = vld [vmem:[#allocation4 + $0x10] sm:$0xff]
    %v473 = vld [vmem:[#allocation4 + $0x18] sm:$0xff]
    %v474 = vld [vmem:[#allocation4 + $0x20] sm:$0xff]
    %v475 = vld [vmem:[#allocation4 + $0x28] sm:$0xff]
    %v476 = vld [vmem:[#allocation4 + $0x30] sm:$0xff]
    %v477 = vld [vmem:[#allocation4 + $0x38] sm:$0xff]
    %v478 = vld [vmem:[#allocation4 + $0x40] sm:$0xff]
    %v479 = vld [vmem:[#allocation4 + $0x48] sm:$0xff]
    %v480 = vld [vmem:[#allocation4 + $0x50] sm:$0xff]
    %v481 = vld [vmem:[#allocation4 + $0x58] sm:$0xff]
    %v482 = vld [vmem:[#allocation4 + $0x60] sm:$0xff]
    %v483 = vld [vmem:[#allocation4 + $0x68] sm:$0xff]
    %v484 = vld [vmem:[#allocation4 + $0x70] sm:$0xff]
    %v485 = vld [vmem:[#allocation4 + $0x78] sm:$0xff]
    %v486 = vld [vmem:[%s1 + $0x1] sm:$0x1]
    %v487 = vlaneseq
    %v488 = vshrl.u32 %v487, 7
    %v489 = vsub.s32 0, %v488
    %v490 = vrot.slane %v486, %v489
    %491 = vmatprep.subr.mxu0 0.0
    %492 = vmatpush1.msra.mxu0 %v485
    %493 = vmatprep.subr.mxu0 0.0
    %494 = vmatpush1.msra.mxu0 %v484
    %495 = vmatprep.subr.mxu0 0.0
    %496 = vmatpush1.msra.mxu0 %v483
    %497 = vmatprep.subr.mxu0 0.0
    %498 = vmatpush1.msra.mxu0 %v482
    %499 = vmatprep.subr.mxu0 0.0
    %500 = vmatpush1.msra.mxu0 %v481
    %501 = vmatprep.subr.mxu0 0.0
    %502 = vmatpush1.msra.mxu0 %v480
    %503 = vmatprep.subr.mxu0 0.0
    %504 = vmatpush1.msra.mxu0 %v479
    %505 = vmatprep.subr.mxu0 0.0
    %506 = vmatpush1.msra.mxu0 %v478
    %507 = vmatprep.subr.mxu0 0.0
    %508 = vmatpush1.msra.mxu0 %v477
    %509 = vmatprep.subr.mxu0 0.0
    %510 = vmatpush1.msra.mxu0 %v476
    %511 = vmatprep.subr.mxu0 0.0
    %512 = vmatpush1.msra.mxu0 %v475
    %513 = vmatprep.subr.mxu0 0.0
    %514 = vmatpush1.msra.mxu0 %v474
    %515 = vmatprep.subr.mxu0 0.0
    %516 = vmatpush1.msra.mxu0 %v473
    %517 = vmatprep.subr.mxu0 0.0
    %518 = vmatpush1.msra.mxu0 %v472
    %519 = vmatprep.subr.mxu0 0.0
    %520 = vmatpush1.msra.mxu0 %v471
    %521 = vmatprep.subr.mxu0 0.0
    %522 = vmatpush1.msra.mxu0 %v470
    %523 = vmatprep.subr.mxu0 0.0
    %524 = vmatpush2.msra.mxu0 0.0
    %525 = vmatprep.subr.mxu0 0.0
    %526 = vmatpush2.msra.mxu0 0.0
    %527 = vmatprep.subr.mxu0 0.0
    %528 = vmatpush2.msra.mxu0 0.0
    %529 = vmatprep.subr.mxu0 0.0
    %530 = vmatpush2.msra.mxu0 0.0
    %531 = vmatprep.subr.mxu0 0.0
    %532 = vmatpush2.msra.mxu0 0.0
    %533 = vmatprep.subr.mxu0 0.0
    %534 = vmatpush2.msra.mxu0 0.0
    %535 = vmatprep.subr.mxu0 0.0
    %536 = vmatpush2.msra.mxu0 0.0
    %537 = vmatprep.subr.mxu0 0.0
    %538 = vmatpush2.msra.mxu0 0.0
    %539 = vmatprep.subr.mxu0 0.0
    %540 = vmatpush2.msra.mxu0 0.0
    %541 = vmatprep.subr.mxu0 0.0
    %542 = vmatpush2.msra.mxu0 0.0
    %543 = vmatprep.subr.mxu0 0.0
    %544 = vmatpush2.msra.mxu0 0.0
    %545 = vmatprep.subr.mxu0 0.0
    %546 = vmatpush2.msra.mxu0 0.0
    %547 = vmatprep.subr.mxu0 0.0
    %548 = vmatpush2.msra.mxu0 0.0
    %549 = vmatprep.subr.mxu0 0.0
    %550 = vmatpush2.msra.mxu0 0.0
    %551 = vmatprep.subr.mxu0 0.0
    %552 = vmatpush2.msra.mxu0 0.0
    %553 = vmatprep.subr.mxu0 0.0
    %554 = vmatpush2.msra.mxu0 0.0
    %555 = vmatprep.mubr.f32.mxu0 0.0
    %556 = vmatmul.mubr.f32.gmra.mxu0 %v469
    %v557 = vpop.f32.mrf.mxu0
    %v558 = vadd.f32 %v490, %v557
    %v559 = vpop.f32.mrf.mxu0
    %560 = vdwg.mxu0
    %v561 = vmax.f32 %v558, 0.0
    %v562 = vld [vmem:[%s4] sm:$0xff]
    %v563 = vld [vmem:[%s4 + $0x8] sm:$0xff]
    %v564 = vld [vmem:[%s4 + $0x10] sm:$0xff]
    %v565 = vld [vmem:[%s4 + $0x18] sm:$0xff]
    %v566 = vld [vmem:[%s4 + $0x20] sm:$0xff]
    %v567 = vld [vmem:[%s4 + $0x28] sm:$0xff]
    %v568 = vld [vmem:[%s4 + $0x30] sm:$0xff]
    %v569 = vld [vmem:[%s4 + $0x38] sm:$0xff]
    %v570 = vld [vmem:[%s4 + $0x40] sm:$0xff]
    %v571 = vld [vmem:[%s4 + $0x48] sm:$0xff]
    %v572 = vld [vmem:[%s4 + $0x50] sm:$0xff]
    %v573 = vld [vmem:[%s4 + $0x58] sm:$0xff]
    %v574 = vld [vmem:[%s4 + $0x60] sm:$0xff]
    %v575 = vld [vmem:[%s4 + $0x68] sm:$0xff]
    %v576 = vld [vmem:[%s4 + $0x70] sm:$0xff]
    %v577 = vld [vmem:[%s4 + $0x78] sm:$0xff]
    %v578 = vld [vmem:[%s1 + $0x2] sm:$0x1]
    %v579 = vlaneseq
    %v580 = vshrl.u32 %v579, 7
    %v581 = vsub.s32 0, %v580
    %v582 = vrot.slane %v578, %v581
    %583 = vmatprep.subr.mxu0 0.0
    %584 = vmatpush1.msra.mxu0 %v577
    %585 = vmatprep.subr.mxu0 0.0
    %586 = vmatpush1.msra.mxu0 %v576
    %587 = vmatprep.subr.mxu0 0.0
    %588 = vmatpush1.msra.mxu0 %v575
    %589 = vmatprep.subr.mxu0 0.0
    %590 = vmatpush1.msra.mxu0 %v574
    %591 = vmatprep.subr.mxu0 0.0
    %592 = vmatpush1.msra.mxu0 %v573
    %593 = vmatprep.subr.mxu0 0.0
    %594 = vmatpush1.msra.mxu0 %v572
    %595 = vmatprep.subr.mxu0 0.0
    %596 = vmatpush1.msra.mxu0 %v571
    %597 = vmatprep.subr.mxu0 0.0
    %598 = vmatpush1.msra.mxu0 %v570
    %599 = vmatprep.subr.mxu0 0.0
    %600 = vmatpush1.msra.mxu0 %v569
    %601 = vmatprep.subr.mxu0 0.0
    %602 = vmatpush1.msra.mxu0 %v568
    %603 = vmatprep.subr.mxu0 0.0
    %604 = vmatpush1.msra.mxu0 %v567
    %605 = vmatprep.subr.mxu0 0.0
    %606 = vmatpush1.msra.mxu0 %v566
    %607 = vmatprep.subr.mxu0 0.0
    %608 = vmatpush1.msra.mxu0 %v565
    %609 = vmatprep.subr.mxu0 0.0
    %610 = vmatpush1.msra.mxu0 %v564
    %611 = vmatprep.subr.mxu0 0.0
    %612 = vmatpush1.msra.mxu0 %v563
    %613 = vmatprep.subr.mxu0 0.0
    %614 = vmatpush1.msra.mxu0 %v562
    %615 = vmatprep.subr.mxu0 0.0
    %616 = vmatpush2.msra.mxu0 0.0
    %617 = vmatprep.subr.mxu0 0.0
    %618 = vmatpush2.msra.mxu0 0.0
    %619 = vmatprep.subr.mxu0 0.0
    %620 = vmatpush2.msra.mxu0 0.0
    %621 = vmatprep.subr.mxu0 0.0
    %622 = vmatpush2.msra.mxu0 0.0
    %623 = vmatprep.subr.mxu0 0.0
    %624 = vmatpush2.msra.mxu0 0.0
    %625 = vmatprep.subr.mxu0 0.0
    %626 = vmatpush2.msra.mxu0 0.0
    %627 = vmatprep.subr.mxu0 0.0
    %628 = vmatpush2.msra.mxu0 0.0
    %629 = vmatprep.subr.mxu0 0.0
    %630 = vmatpush2.msra.mxu0 0.0
    %631 = vmatprep.subr.mxu0 0.0
    %632 = vmatpush2.msra.mxu0 0.0
    %633 = vmatprep.subr.mxu0 0.0
    %634 = vmatpush2.msra.mxu0 0.0
    %635 = vmatprep.subr.mxu0 0.0
    %636 = vmatpush2.msra.mxu0 0.0
    %637 = vmatprep.subr.mxu0 0.0
    %638 = vmatpush2.msra.mxu0 0.0
    %639 = vmatprep.subr.mxu0 0.0
    %640 = vmatpush2.msra.mxu0 0.0
    %641 = vmatprep.subr.mxu0 0.0
    %642 = vmatpush2.msra.mxu0 0.0
    %643 = vmatprep.subr.mxu0 0.0
    %644 = vmatpush2.msra.mxu0 0.0
    %645 = vmatprep.subr.mxu0 0.0
    %646 = vmatpush2.msra.mxu0 0.0
    %647 = vmatprep.mubr.f32.mxu0 0.0
    %648 = vmatmul.mubr.f32.gmra.mxu0 %v561
    %v649 = vpop.f32.mrf.mxu0
    %v650 = vadd.f32 %v582, %v649
    %v651 = vpop.f32.mrf.mxu0
    %652 = vdwg.mxu0
    %653 = vst [vmem:[%s5] sm:$0xff] %v650
    // Predicated region
    $region30: #{forward.1} parent=1 // pred_check
      _
    $region31: #{forward.1} parent=1 // pred_check_branch
      %655 = sbr.rel (0) target = $region33
    $region32: #{forward.1} parent=1 // pred_region
      _
    $region33: #{forward.1} parent=1 // pred_fallthru
      _
    // Predicated region
    $region34: #{forward.1} parent=1 // pred_check
      _
    $region35: #{forward.1} parent=1 // pred_check_branch
      %657 = sbr.rel (0) target = $region37
    $region36: #{forward.1} parent=1 // pred_region
      _
    $region37: #{forward.1} parent=1 // pred_fallthru
      _
    %658 = vsyncpa [#allocation3], 1
    %659 = vsyncpa [#allocation5], 1

</llo_original>
